<compile_context>
chip_gen: v7x
topology: tpu7x:2x2x1
jax: 0.10.0
libtpu: 0.0.40
codegen_flags: <defaults>
</compile_context>

<pallas_src>
import jax
import jax.numpy as jnp
from jax import lax
from jax.experimental import pallas as pl
from jax.experimental.pallas import tpu as pltpu

_LANES = 128
_MAX_STRIP = 32        # rows per in-kernel strip (4 vregs per f32 intermediate)
_MAX_BLOCK_ROWS = 1024  # 128 Ki batch elements, ~0.5 MiB per f32 buffer


def _make_kernel(d, strip, n_strips, offs):
    """Build the kernel for hidden width d, in-tile strip size, #strips."""
    o_w1, o_b1, o_w2, o_b2, o_w3, o_b3 = offs

    def kernel(p_ref, inp_ref, noise_ref, o_ref):
        # Hoist every scalar read out of the strip loop (SMEM -> scalars once).
        w1 = [[p_ref[o_w1 + i * d + j] for j in range(d)] for i in range(2)]
        b1 = [p_ref[o_b1 + j] for j in range(d)]
        w2 = [[p_ref[o_w2 + k * d + j] for j in range(d)] for k in range(d)]
        b2 = [p_ref[o_b2 + j] for j in range(d)]
        w3 = [p_ref[o_w3 + j] for j in range(d)]
        b3 = p_ref[o_b3]

        def compute_strip(r0):
            xi = inp_ref[pl.ds(r0, strip), :]      # (strip, 128) f32
            xn = noise_ref[pl.ds(r0, strip), :]

            # fc1 (fused concat: feature0 = input, feature1 = noise) + leaky(0.1)
            h1 = []
            for j in range(d):
                h = w1[0][j] * xi + w1[1][j] * xn + b1[j]
                h1.append(jnp.maximum(h, 0.1 * h))

            # fc2 + leaky(0.1), with fc3 accumulated on the fly (no h2 list).
            out = None
            for j in range(d):
                acc = h1[0] * w2[0][j]
                for k in range(1, d):
                    acc = acc + h1[k] * w2[k][j]
                acc = acc + b2[j]
                acc = jnp.maximum(acc, 0.1 * acc)            # leaky_relu(0.1)
                term = acc * w3[j]
                out = term if out is None else out + term
            out = out + b3

            # sigmoid(x) = 0.5 * tanh(0.5 * x) + 0.5  -- single EUP op.
            o_ref[pl.ds(r0, strip), :] = 0.5 * jnp.tanh(0.5 * out) + 0.5

        if n_strips == 1:
            compute_strip(0)
        else:
            def body(s, carry):
                compute_strip(pl.multiple_of(s * strip, strip))
                return carry
            lax.fori_loop(0, n_strips, body, 0, unroll=min(4, n_strips))

    return kernel


def random_shift_forward(inp, noise, params, *, block_rows=None):
    """inp: (B, 1), noise: (B, 1) -> (B, 1) sigmoid output (float32)."""
    w1, b1, w2, b2, w3, b3 = params
    din, d = w1.shape
    assert din == 2, "fc1 consumes cat([input, noise], dim=1)"
    B = inp.shape[0]

    # Flatten all weight/bias scalars into ONE 1-D f32 SMEM operand.
    flat = jnp.concatenate([
        jnp.reshape(w1, (-1,)), jnp.reshape(b1, (-1,)),
        jnp.reshape(w2, (-1,)), jnp.reshape(b2, (-1,)),
        jnp.reshape(w3, (-1,)), jnp.reshape(b3, (-1,)),
    ]).astype(jnp.float32)
    o_w1 = 0
    o_b1 = o_w1 + 2 * d
    o_w2 = o_b1 + d
    o_b2 = o_w2 + d * d
    o_w3 = o_b2 + d
    o_b3 = o_w3 + d
    offs = (o_w1, o_b1, o_w2, o_b2, o_w3, o_b3)

    xi = jnp.reshape(inp, (-1,)).astype(jnp.float32)
    xn = jnp.reshape(noise, (-1,)).astype(jnp.float32)

    # Batch -> lane-dense (rows, 128). Pad only to the next multiple of 128
    # (never to the block size); Pallas handles the ragged last block.
    rows = pl.cdiv(B, _LANES)
    b_pad = rows * _LANES
    if b_pad != B:
        xi = jnp.pad(xi, (0, b_pad - B))
        xn = jnp.pad(xn, (0, b_pad - B))
    xi = xi.reshape(rows, _LANES)
    xn = xn.reshape(rows, _LANES)

    # Tile choice: >= 2 grid blocks whenever rows >= 16 (both TCs on v7x),
    # capped at _MAX_BLOCK_ROWS for large batches.
    if block_rows is None:
        block_rows = rows if rows < 16 else pl.cdiv(rows, 2)
        block_rows = min(_MAX_BLOCK_ROWS, block_rows)
    block_rows = max(8, -(-block_rows // 8) * 8)             # sublane multiple
    if block_rows > _MAX_STRIP:                              # strip must divide
        block_rows = -(-block_rows // _MAX_STRIP) * _MAX_STRIP
    strip = min(_MAX_STRIP, block_rows)
    n_strips = block_rows // strip

    grid = (pl.cdiv(rows, block_rows),)
    smem_spec = pl.BlockSpec(memory_space=pltpu.MemorySpace.SMEM)
    row_spec = pl.BlockSpec((block_rows, _LANES), lambda i: (i, 0))

    out = pl.pallas_call(
        _make_kernel(d, strip, n_strips, offs),
        grid=grid,
        out_shape=jax.ShapeDtypeStruct((rows, _LANES), jnp.float32),
        in_specs=[smem_spec, row_spec, row_spec],
        out_specs=row_spec,
        compiler_params=pltpu.CompilerParams(
            dimension_semantics=("parallel",),   # batch tiles across TCs (v7x)
            vmem_limit_bytes=32 * 1024 * 1024,   # safe on v5e/v6e/v7x
        ),
    )(flat, xi, xn)

    if b_pad == B:
        return out.reshape(B, 1)                 # free reshape, no slice copy
    return out.reshape(-1)[:B].reshape(B, 1)


def init_params(key, input_size=2, d=5):
    """Mirror of the PyTorch module init: Linear weights ~ N(0, 1)
    (__initialize_weights); biases keep the PyTorch-default
    U(-1/sqrt(fan_in), 1/sqrt(fan_in)). Weights stored (in, out)."""
    k1, k2, k3, k4, k5, k6 = jax.random.split(key, 6)

    def linear(kw, kb, fan_in, fan_out):
        w = jax.random.normal(kw, (fan_out, fan_in), jnp.float32).T  # (in, out)
        bound = 1.0 / float(fan_in) ** 0.5
        b = jax.random.uniform(kb, (fan_out,), jnp.float32, -bound, bound)
        return w, b

    w1, b1 = linear(k1, k2, input_size, d)
    w2, b2 = linear(k3, k4, d, d)
    w3, b3 = linear(k5, k6, d, 1)
    return (w1, b1, w2, b2, jnp.reshape(w3, (d,)), b3)


def reference_forward(inp, noise, params):
    """Pure-JAX reference for sanity checking."""
    w1, b1, w2, b2, w3, b3 = params
    x = jnp.concatenate([inp, noise], axis=1).astype(jnp.float32)
    h = x @ w1 + b1
    h = jnp.where(h > 0, h, 0.1 * h)
    h = h @ w2 + b2
    h = jnp.where(h > 0, h, 0.1 * h)
    h = h @ w3[:, None] + b3
    return jax.nn.sigmoid(h)


if __name__ == "__main__":
    key = jax.random.PRNGKey(0)
    k_param, k_in, k_noise = jax.random.split(key, 3)

    input_size = 2   # fc1 sees cat([input(1), noise(1)], dim=1)
    d = 5            # module default hidden width
    params = init_params(k_param, input_size=input_size, d=d)

    # Case 1: small, non-multiple of 128 -> exercises the pad + slice path.
    B = 37
    inp = jax.random.normal(k_in, (B, 1), jnp.float32)
    noise = jax.random.normal(k_noise, (B, 1), jnp.float32)
    out = jax.block_until_ready(random_shift_forward(inp, noise, params))
    ref = reference_forward(inp, noise, params)
    assert out.shape == (B, 1)
    assert jnp.allclose(out, ref, atol=2e-5, rtol=2e-5), "mismatch (B=37)"

    # Case 2: multi-tile grid (2 blocks) with a ragged last block.
    B2 = 2100
    k_in2, k_noise2 = jax.random.split(k_in)
    inp2 = jax.random.normal(k_in2, (B2, 1), jnp.float32)
    noise2 = jax.random.normal(k_noise2, (B2, 1), jnp.float32)
    out2 = jax.block_until_ready(random_shift_forward(inp2, noise2, params))
    ref2 = reference_forward(inp2, noise2, params)
    assert out2.shape == (B2, 1)
    assert jnp.allclose(out2, ref2, atol=2e-5, rtol=2e-5), "mismatch (B=2100)"

    print("KERNEL_OK")
</pallas_src>

<mosaic_0001>
module attributes {stable_mosaic.version = 11 : i64} {
  func.func @kernel(%arg0: i32, %arg1: memref<51xf32, #tpu.memory_space<smem>>, %arg2: memref<8x128xf32, #tpu.memory_space<vmem>>, %arg3: memref<8x128xf32, #tpu.memory_space<vmem>>, %arg4: memref<8x128xf32, #tpu.memory_space<vmem>>) attributes {dimension_semantics = [#tpu.dimension_semantics<parallel>], iteration_bounds = array<i64: 1>, scalar_prefetch = 0 : i64, scratch_operands = 0 : i64, tpu.core_type = #tpu.core_type<tc>, window_params = [{transform_indices = @transform_0, window_bounds = array<i64: 51>}, {transform_indices = @transform_1, window_bounds = array<i64: 8, 128>}, {transform_indices = @transform_2, window_bounds = array<i64: 8, 128>}, {transform_indices = @transform_3, window_bounds = array<i64: 8, 128>}]} {
    %c0 = arith.constant 0 : index
    %0 = memref.load %arg1[%c0] : memref<51xf32, #tpu.memory_space<smem>>
    %c1 = arith.constant 1 : index
    %1 = memref.load %arg1[%c1] : memref<51xf32, #tpu.memory_space<smem>>
    %c2 = arith.constant 2 : index
    %2 = memref.load %arg1[%c2] : memref<51xf32, #tpu.memory_space<smem>>
    %c3 = arith.constant 3 : index
    %3 = memref.load %arg1[%c3] : memref<51xf32, #tpu.memory_space<smem>>
    %c4 = arith.constant 4 : index
    %4 = memref.load %arg1[%c4] : memref<51xf32, #tpu.memory_space<smem>>
    %c5 = arith.constant 5 : index
    %5 = memref.load %arg1[%c5] : memref<51xf32, #tpu.memory_space<smem>>
    %c6 = arith.constant 6 : index
    %6 = memref.load %arg1[%c6] : memref<51xf32, #tpu.memory_space<smem>>
    %c7 = arith.constant 7 : index
    %7 = memref.load %arg1[%c7] : memref<51xf32, #tpu.memory_space<smem>>
    %c8 = arith.constant 8 : index
    %8 = memref.load %arg1[%c8] : memref<51xf32, #tpu.memory_space<smem>>
    %c9 = arith.constant 9 : index
    %9 = memref.load %arg1[%c9] : memref<51xf32, #tpu.memory_space<smem>>
    %c10 = arith.constant 10 : index
    %10 = memref.load %arg1[%c10] : memref<51xf32, #tpu.memory_space<smem>>
    %c11 = arith.constant 11 : index
    %11 = memref.load %arg1[%c11] : memref<51xf32, #tpu.memory_space<smem>>
    %c12 = arith.constant 12 : index
    %12 = memref.load %arg1[%c12] : memref<51xf32, #tpu.memory_space<smem>>
    %c13 = arith.constant 13 : index
    %13 = memref.load %arg1[%c13] : memref<51xf32, #tpu.memory_space<smem>>
    %c14 = arith.constant 14 : index
    %14 = memref.load %arg1[%c14] : memref<51xf32, #tpu.memory_space<smem>>
    %c15 = arith.constant 15 : index
    %15 = memref.load %arg1[%c15] : memref<51xf32, #tpu.memory_space<smem>>
    %c16 = arith.constant 16 : index
    %16 = memref.load %arg1[%c16] : memref<51xf32, #tpu.memory_space<smem>>
    %c17 = arith.constant 17 : index
    %17 = memref.load %arg1[%c17] : memref<51xf32, #tpu.memory_space<smem>>
    %c18 = arith.constant 18 : index
    %18 = memref.load %arg1[%c18] : memref<51xf32, #tpu.memory_space<smem>>
    %c19 = arith.constant 19 : index
    %19 = memref.load %arg1[%c19] : memref<51xf32, #tpu.memory_space<smem>>
    %c20 = arith.constant 20 : index
    %20 = memref.load %arg1[%c20] : memref<51xf32, #tpu.memory_space<smem>>
    %c21 = arith.constant 21 : index
    %21 = memref.load %arg1[%c21] : memref<51xf32, #tpu.memory_space<smem>>
    %c22 = arith.constant 22 : index
    %22 = memref.load %arg1[%c22] : memref<51xf32, #tpu.memory_space<smem>>
    %c23 = arith.constant 23 : index
    %23 = memref.load %arg1[%c23] : memref<51xf32, #tpu.memory_space<smem>>
    %c24 = arith.constant 24 : index
    %24 = memref.load %arg1[%c24] : memref<51xf32, #tpu.memory_space<smem>>
    %c25 = arith.constant 25 : index
    %25 = memref.load %arg1[%c25] : memref<51xf32, #tpu.memory_space<smem>>
    %c26 = arith.constant 26 : index
    %26 = memref.load %arg1[%c26] : memref<51xf32, #tpu.memory_space<smem>>
    %c27 = arith.constant 27 : index
    %27 = memref.load %arg1[%c27] : memref<51xf32, #tpu.memory_space<smem>>
    %c28 = arith.constant 28 : index
    %28 = memref.load %arg1[%c28] : memref<51xf32, #tpu.memory_space<smem>>
    %c29 = arith.constant 29 : index
    %29 = memref.load %arg1[%c29] : memref<51xf32, #tpu.memory_space<smem>>
    %c30 = arith.constant 30 : index
    %30 = memref.load %arg1[%c30] : memref<51xf32, #tpu.memory_space<smem>>
    %c31 = arith.constant 31 : index
    %31 = memref.load %arg1[%c31] : memref<51xf32, #tpu.memory_space<smem>>
    %c32 = arith.constant 32 : index
    %32 = memref.load %arg1[%c32] : memref<51xf32, #tpu.memory_space<smem>>
    %c33 = arith.constant 33 : index
    %33 = memref.load %arg1[%c33] : memref<51xf32, #tpu.memory_space<smem>>
    %c34 = arith.constant 34 : index
    %34 = memref.load %arg1[%c34] : memref<51xf32, #tpu.memory_space<smem>>
    %c35 = arith.constant 35 : index
    %35 = memref.load %arg1[%c35] : memref<51xf32, #tpu.memory_space<smem>>
    %c36 = arith.constant 36 : index
    %36 = memref.load %arg1[%c36] : memref<51xf32, #tpu.memory_space<smem>>
    %c37 = arith.constant 37 : index
    %37 = memref.load %arg1[%c37] : memref<51xf32, #tpu.memory_space<smem>>
    %c38 = arith.constant 38 : index
    %38 = memref.load %arg1[%c38] : memref<51xf32, #tpu.memory_space<smem>>
    %c39 = arith.constant 39 : index
    %39 = memref.load %arg1[%c39] : memref<51xf32, #tpu.memory_space<smem>>
    %c40 = arith.constant 40 : index
    %40 = memref.load %arg1[%c40] : memref<51xf32, #tpu.memory_space<smem>>
    %c41 = arith.constant 41 : index
    %41 = memref.load %arg1[%c41] : memref<51xf32, #tpu.memory_space<smem>>
    %c42 = arith.constant 42 : index
    %42 = memref.load %arg1[%c42] : memref<51xf32, #tpu.memory_space<smem>>
    %c43 = arith.constant 43 : index
    %43 = memref.load %arg1[%c43] : memref<51xf32, #tpu.memory_space<smem>>
    %c44 = arith.constant 44 : index
    %44 = memref.load %arg1[%c44] : memref<51xf32, #tpu.memory_space<smem>>
    %c45 = arith.constant 45 : index
    %45 = memref.load %arg1[%c45] : memref<51xf32, #tpu.memory_space<smem>>
    %c46 = arith.constant 46 : index
    %46 = memref.load %arg1[%c46] : memref<51xf32, #tpu.memory_space<smem>>
    %c47 = arith.constant 47 : index
    %47 = memref.load %arg1[%c47] : memref<51xf32, #tpu.memory_space<smem>>
    %c48 = arith.constant 48 : index
    %48 = memref.load %arg1[%c48] : memref<51xf32, #tpu.memory_space<smem>>
    %c49 = arith.constant 49 : index
    %49 = memref.load %arg1[%c49] : memref<51xf32, #tpu.memory_space<smem>>
    %c50 = arith.constant 50 : index
    %50 = memref.load %arg1[%c50] : memref<51xf32, #tpu.memory_space<smem>>
    %c0_0 = arith.constant 0 : index
    %c0_1 = arith.constant 0 : index
    %51 = vector.load %arg2[%c0_0, %c0_1] : memref<8x128xf32, #tpu.memory_space<vmem>>, vector<8x128xf32>
    %c0_2 = arith.constant 0 : index
    %c0_3 = arith.constant 0 : index
    %52 = vector.load %arg3[%c0_2, %c0_3] : memref<8x128xf32, #tpu.memory_space<vmem>>, vector<8x128xf32>
    %53 = vector.broadcast %0 : f32 to vector<8x128xf32>
    %54 = arith.mulf %53, %51 : vector<8x128xf32>
    %55 = vector.broadcast %5 : f32 to vector<8x128xf32>
    %56 = arith.mulf %55, %52 : vector<8x128xf32>
    %57 = arith.addf %54, %56 : vector<8x128xf32>
    %58 = vector.broadcast %10 : f32 to vector<8x128xf32>
    %59 = arith.addf %57, %58 : vector<8x128xf32>
    %cst = arith.constant 1.000000e-01 : f32
    %60 = vector.broadcast %cst : f32 to vector<8x128xf32>
    %61 = arith.mulf %60, %59 : vector<8x128xf32>
    %62 = arith.maximumf %59, %61 : vector<8x128xf32>
    %63 = vector.broadcast %1 : f32 to vector<8x128xf32>
    %64 = arith.mulf %63, %51 : vector<8x128xf32>
    %65 = vector.broadcast %6 : f32 to vector<8x128xf32>
    %66 = arith.mulf %65, %52 : vector<8x128xf32>
    %67 = arith.addf %64, %66 : vector<8x128xf32>
    %68 = vector.broadcast %11 : f32 to vector<8x128xf32>
    %69 = arith.addf %67, %68 : vector<8x128xf32>
    %cst_4 = arith.constant 1.000000e-01 : f32
    %70 = vector.broadcast %cst_4 : f32 to vector<8x128xf32>
    %71 = arith.mulf %70, %69 : vector<8x128xf32>
    %72 = arith.maximumf %69, %71 : vector<8x128xf32>
    %73 = vector.broadcast %2 : f32 to vector<8x128xf32>
    %74 = arith.mulf %73, %51 : vector<8x128xf32>
    %75 = vector.broadcast %7 : f32 to vector<8x128xf32>
    %76 = arith.mulf %75, %52 : vector<8x128xf32>
    %77 = arith.addf %74, %76 : vector<8x128xf32>
    %78 = vector.broadcast %12 : f32 to vector<8x128xf32>
    %79 = arith.addf %77, %78 : vector<8x128xf32>
    %cst_5 = arith.constant 1.000000e-01 : f32
    %80 = vector.broadcast %cst_5 : f32 to vector<8x128xf32>
    %81 = arith.mulf %80, %79 : vector<8x128xf32>
    %82 = arith.maximumf %79, %81 : vector<8x128xf32>
    %83 = vector.broadcast %3 : f32 to vector<8x128xf32>
    %84 = arith.mulf %83, %51 : vector<8x128xf32>
    %85 = vector.broadcast %8 : f32 to vector<8x128xf32>
    %86 = arith.mulf %85, %52 : vector<8x128xf32>
    %87 = arith.addf %84, %86 : vector<8x128xf32>
    %88 = vector.broadcast %13 : f32 to vector<8x128xf32>
    %89 = arith.addf %87, %88 : vector<8x128xf32>
    %cst_6 = arith.constant 1.000000e-01 : f32
    %90 = vector.broadcast %cst_6 : f32 to vector<8x128xf32>
    %91 = arith.mulf %90, %89 : vector<8x128xf32>
    %92 = arith.maximumf %89, %91 : vector<8x128xf32>
    %93 = vector.broadcast %4 : f32 to vector<8x128xf32>
    %94 = arith.mulf %93, %51 : vector<8x128xf32>
    %95 = vector.broadcast %9 : f32 to vector<8x128xf32>
    %96 = arith.mulf %95, %52 : vector<8x128xf32>
    %97 = arith.addf %94, %96 : vector<8x128xf32>
    %98 = vector.broadcast %14 : f32 to vector<8x128xf32>
    %99 = arith.addf %97, %98 : vector<8x128xf32>
    %cst_7 = arith.constant 1.000000e-01 : f32
    %100 = vector.broadcast %cst_7 : f32 to vector<8x128xf32>
    %101 = arith.mulf %100, %99 : vector<8x128xf32>
    %102 = arith.maximumf %99, %101 : vector<8x128xf32>
    %103 = vector.broadcast %15 : f32 to vector<8x128xf32>
    %104 = arith.mulf %62, %103 : vector<8x128xf32>
    %105 = vector.broadcast %20 : f32 to vector<8x128xf32>
    %106 = arith.mulf %72, %105 : vector<8x128xf32>
    %107 = arith.addf %104, %106 : vector<8x128xf32>
    %108 = vector.broadcast %25 : f32 to vector<8x128xf32>
    %109 = arith.mulf %82, %108 : vector<8x128xf32>
    %110 = arith.addf %107, %109 : vector<8x128xf32>
    %111 = vector.broadcast %30 : f32 to vector<8x128xf32>
    %112 = arith.mulf %92, %111 : vector<8x128xf32>
    %113 = arith.addf %110, %112 : vector<8x128xf32>
    %114 = vector.broadcast %35 : f32 to vector<8x128xf32>
    %115 = arith.mulf %102, %114 : vector<8x128xf32>
    %116 = arith.addf %113, %115 : vector<8x128xf32>
    %117 = vector.broadcast %40 : f32 to vector<8x128xf32>
    %118 = arith.addf %116, %117 : vector<8x128xf32>
    %cst_8 = arith.constant 1.000000e-01 : f32
    %119 = vector.broadcast %cst_8 : f32 to vector<8x128xf32>
    %120 = arith.mulf %119, %118 : vector<8x128xf32>
    %121 = arith.maximumf %118, %120 : vector<8x128xf32>
    %122 = vector.broadcast %45 : f32 to vector<8x128xf32>
    %123 = arith.mulf %121, %122 : vector<8x128xf32>
    %124 = vector.broadcast %16 : f32 to vector<8x128xf32>
    %125 = arith.mulf %62, %124 : vector<8x128xf32>
    %126 = vector.broadcast %21 : f32 to vector<8x128xf32>
    %127 = arith.mulf %72, %126 : vector<8x128xf32>
    %128 = arith.addf %125, %127 : vector<8x128xf32>
    %129 = vector.broadcast %26 : f32 to vector<8x128xf32>
    %130 = arith.mulf %82, %129 : vector<8x128xf32>
    %131 = arith.addf %128, %130 : vector<8x128xf32>
    %132 = vector.broadcast %31 : f32 to vector<8x128xf32>
    %133 = arith.mulf %92, %132 : vector<8x128xf32>
    %134 = arith.addf %131, %133 : vector<8x128xf32>
    %135 = vector.broadcast %36 : f32 to vector<8x128xf32>
    %136 = arith.mulf %102, %135 : vector<8x128xf32>
    %137 = arith.addf %134, %136 : vector<8x128xf32>
    %138 = vector.broadcast %41 : f32 to vector<8x128xf32>
    %139 = arith.addf %137, %138 : vector<8x128xf32>
    %cst_9 = arith.constant 1.000000e-01 : f32
    %140 = vector.broadcast %cst_9 : f32 to vector<8x128xf32>
    %141 = arith.mulf %140, %139 : vector<8x128xf32>
    %142 = arith.maximumf %139, %141 : vector<8x128xf32>
    %143 = vector.broadcast %46 : f32 to vector<8x128xf32>
    %144 = arith.mulf %142, %143 : vector<8x128xf32>
    %145 = arith.addf %123, %144 : vector<8x128xf32>
    %146 = vector.broadcast %17 : f32 to vector<8x128xf32>
    %147 = arith.mulf %62, %146 : vector<8x128xf32>
    %148 = vector.broadcast %22 : f32 to vector<8x128xf32>
    %149 = arith.mulf %72, %148 : vector<8x128xf32>
    %150 = arith.addf %147, %149 : vector<8x128xf32>
    %151 = vector.broadcast %27 : f32 to vector<8x128xf32>
    %152 = arith.mulf %82, %151 : vector<8x128xf32>
    %153 = arith.addf %150, %152 : vector<8x128xf32>
    %154 = vector.broadcast %32 : f32 to vector<8x128xf32>
    %155 = arith.mulf %92, %154 : vector<8x128xf32>
    %156 = arith.addf %153, %155 : vector<8x128xf32>
    %157 = vector.broadcast %37 : f32 to vector<8x128xf32>
    %158 = arith.mulf %102, %157 : vector<8x128xf32>
    %159 = arith.addf %156, %158 : vector<8x128xf32>
    %160 = vector.broadcast %42 : f32 to vector<8x128xf32>
    %161 = arith.addf %159, %160 : vector<8x128xf32>
    %cst_10 = arith.constant 1.000000e-01 : f32
    %162 = vector.broadcast %cst_10 : f32 to vector<8x128xf32>
    %163 = arith.mulf %162, %161 : vector<8x128xf32>
    %164 = arith.maximumf %161, %163 : vector<8x128xf32>
    %165 = vector.broadcast %47 : f32 to vector<8x128xf32>
    %166 = arith.mulf %164, %165 : vector<8x128xf32>
    %167 = arith.addf %145, %166 : vector<8x128xf32>
    %168 = vector.broadcast %18 : f32 to vector<8x128xf32>
    %169 = arith.mulf %62, %168 : vector<8x128xf32>
    %170 = vector.broadcast %23 : f32 to vector<8x128xf32>
    %171 = arith.mulf %72, %170 : vector<8x128xf32>
    %172 = arith.addf %169, %171 : vector<8x128xf32>
    %173 = vector.broadcast %28 : f32 to vector<8x128xf32>
    %174 = arith.mulf %82, %173 : vector<8x128xf32>
    %175 = arith.addf %172, %174 : vector<8x128xf32>
    %176 = vector.broadcast %33 : f32 to vector<8x128xf32>
    %177 = arith.mulf %92, %176 : vector<8x128xf32>
    %178 = arith.addf %175, %177 : vector<8x128xf32>
    %179 = vector.broadcast %38 : f32 to vector<8x128xf32>
    %180 = arith.mulf %102, %179 : vector<8x128xf32>
    %181 = arith.addf %178, %180 : vector<8x128xf32>
    %182 = vector.broadcast %43 : f32 to vector<8x128xf32>
    %183 = arith.addf %181, %182 : vector<8x128xf32>
    %cst_11 = arith.constant 1.000000e-01 : f32
    %184 = vector.broadcast %cst_11 : f32 to vector<8x128xf32>
    %185 = arith.mulf %184, %183 : vector<8x128xf32>
    %186 = arith.maximumf %183, %185 : vector<8x128xf32>
    %187 = vector.broadcast %48 : f32 to vector<8x128xf32>
    %188 = arith.mulf %186, %187 : vector<8x128xf32>
    %189 = arith.addf %167, %188 : vector<8x128xf32>
    %190 = vector.broadcast %19 : f32 to vector<8x128xf32>
    %191 = arith.mulf %62, %190 : vector<8x128xf32>
    %192 = vector.broadcast %24 : f32 to vector<8x128xf32>
    %193 = arith.mulf %72, %192 : vector<8x128xf32>
    %194 = arith.addf %191, %193 : vector<8x128xf32>
    %195 = vector.broadcast %29 : f32 to vector<8x128xf32>
    %196 = arith.mulf %82, %195 : vector<8x128xf32>
    %197 = arith.addf %194, %196 : vector<8x128xf32>
    %198 = vector.broadcast %34 : f32 to vector<8x128xf32>
    %199 = arith.mulf %92, %198 : vector<8x128xf32>
    %200 = arith.addf %197, %199 : vector<8x128xf32>
    %201 = vector.broadcast %39 : f32 to vector<8x128xf32>
    %202 = arith.mulf %102, %201 : vector<8x128xf32>
    %203 = arith.addf %200, %202 : vector<8x128xf32>
    %204 = vector.broadcast %44 : f32 to vector<8x128xf32>
    %205 = arith.addf %203, %204 : vector<8x128xf32>
    %cst_12 = arith.constant 1.000000e-01 : f32
    %206 = vector.broadcast %cst_12 : f32 to vector<8x128xf32>
    %207 = arith.mulf %206, %205 : vector<8x128xf32>
    %208 = arith.maximumf %205, %207 : vector<8x128xf32>
    %209 = vector.broadcast %49 : f32 to vector<8x128xf32>
    %210 = arith.mulf %208, %209 : vector<8x128xf32>
    %211 = arith.addf %189, %210 : vector<8x128xf32>
    %212 = vector.broadcast %50 : f32 to vector<8x128xf32>
    %213 = arith.addf %211, %212 : vector<8x128xf32>
    %cst_13 = arith.constant 5.000000e-01 : f32
    %214 = vector.broadcast %cst_13 : f32 to vector<8x128xf32>
    %215 = arith.mulf %214, %213 : vector<8x128xf32>
    %216 = math.tanh %215 : vector<8x128xf32>
    %cst_14 = arith.constant 5.000000e-01 : f32
    %217 = vector.broadcast %cst_14 : f32 to vector<8x128xf32>
    %218 = arith.mulf %217, %216 : vector<8x128xf32>
    %cst_15 = arith.constant 5.000000e-01 : f32
    %219 = vector.broadcast %cst_15 : f32 to vector<8x128xf32>
    %220 = arith.addf %218, %219 : vector<8x128xf32>
    %c0_16 = arith.constant 0 : index
    %c0_17 = arith.constant 0 : index
    %221 = vector.load %arg4[%c0_16, %c0_17] : memref<8x128xf32, #tpu.memory_space<vmem>>, vector<8x128xf32>
    tpu.vector_store %arg4[%c0_16, %c0_17], %220 {strides = array<i32>} : memref<8x128xf32, #tpu.memory_space<vmem>>, vector<8x128xf32>,
    return
  }
  func.func @transform_0(%arg0: i32) -> i32 {
    %c0_i32 = arith.constant 0 : i32
    %c0_i32_0 = arith.constant 0 : i32
    return %c0_i32 : i32
  }
  func.func @transform_1(%arg0: i32) -> (i32, i32) {
    %c0_i32 = arith.constant 0 : i32
    %c0_i32_0 = arith.constant 0 : i32
    return %arg0, %c0_i32 : i32, i32
  }
  func.func @transform_2(%arg0: i32) -> (i32, i32) {
    %c0_i32 = arith.constant 0 : i32
    %c0_i32_0 = arith.constant 0 : i32
    return %arg0, %c0_i32 : i32, i32
  }
  func.func @transform_3(%arg0: i32) -> (i32, i32) {
    %c0_i32 = arith.constant 0 : i32
    %c0_i32_0 = arith.constant 0 : i32
    return %arg0, %c0_i32 : i32, i32
  }
}

</mosaic_0001>

<llo_original>
// kernel: tpu_custom_call.1
$region0: #{tpu_custom_call.1}
  #allocation0 [shape = 'u32[]', space=smem, size = 0x4, offset = 0x4, fixed_abs, tag = 'smem constant byte address 0x4 - core index']
  #allocation1 [shape = 'u32[144,128]{1,0:T(1,128)}', space=vmem, size = 0x12000, scoped, tag = 'internal scratch']
  %s0 = inlined_call_operand.hbm [shape: f32[51], index: 0, kind: input, shape index: {}]
  %s1 = inlined_call_operand.vmem [shape: f32[1,128], index: 1, kind: input, shape index: {}]
  %s2 = inlined_call_operand.vmem [shape: f32[1,128], index: 2, kind: input, shape index: {}]
  %s3 = inlined_call_operand.hbm [shape: f32[1,128], index: 3, kind: output, shape index: {}]
  %s4 = sld [smem:[#allocation0]]
  $region26: #{tpu_custom_call.1} parent=0
    _
  %s6 = ssub.s32 1, %s4
  %s7 = scalar_select 0, %s6, %s4
  $region1: #{tpu_custom_call.1} parent=0
    #allocation2 [shape = 'u8[512]{0}', space=smem, size = 0x200, scoped, tag = 'input window, operand 0, single buffered']
    #allocation3 [shape = 's32[1]{0}', space=sflag, size = 0x4, scoped, tag = 'scoped memory for tpu_custom_call.1']
    #allocation4 [shape = 's32[1]{0}', space=sflag, size = 0x4, scoped, tag = 'scoped memory for tpu_custom_call.1']
    #allocation5 [shape = 'u8[4096]{0}', space=vmem, size = 0x1000, scoped, tag = 'output window, operand 0, single buffered']
    %8 = vsyncpa [#allocation4], 0
    %9 = vsyncpa [#allocation3], 0
    // Predicated region
    $region2: #{tpu_custom_call.1} parent=1 // pred_check
      _
    $region3: #{tpu_custom_call.1} parent=1 // pred_check_branch
      %11 = sbr.rel (0) target = $region5
    $region4: #{tpu_custom_call.1} parent=1 // pred_region
      %s13 = ssub.s32 16, 16
      %14 = vsyncadd [#allocation4], %s13
      %17 = dma.hbm_to_smem %s0, 16, [#allocation2], [#allocation4]
    $region5: #{tpu_custom_call.1} parent=1 // pred_fallthru
      _
    // Predicated region
    $region6: #{tpu_custom_call.1} parent=1 // pred_check
      _
    $region7: #{tpu_custom_call.1} parent=1 // pred_check_branch
      %19 = sbr.rel (0) target = $region9
    $region8: #{tpu_custom_call.1} parent=1 // pred_region
      _
    $region9: #{tpu_custom_call.1} parent=1 // pred_fallthru
      _
    // Predicated region
    $region10: #{tpu_custom_call.1} parent=1 // pred_check
      _
    $region11: #{tpu_custom_call.1} parent=1 // pred_check_branch
      %21 = sbr.rel (0) target = $region13
    $region12: #{tpu_custom_call.1} parent=1 // pred_region
      _
    $region13: #{tpu_custom_call.1} parent=1 // pred_fallthru
      _
    // Predicated region
    $region14: #{tpu_custom_call.1} parent=1 // pred_check
      _
    $region15: #{tpu_custom_call.1} parent=1 // pred_check_branch
      %23 = sbr.rel (0) target = $region17
    $region16: #{tpu_custom_call.1} parent=1 // pred_region
      %24 = dma.done [#allocation4], 16
    $region17: #{tpu_custom_call.1} parent=1 // pred_fallthru
      _
    %25 = sfence
    %s26 = sld [smem:[#allocation2]]
    %s27 = sld [smem:[#allocation2 + $0x1]]
    %s28 = sld [smem:[#allocation2 + $0x2]]
    %s29 = sld [smem:[#allocation2 + $0x3]]
    %s30 = sld [smem:[#allocation2 + $0x4]]
    %s31 = sld [smem:[#allocation2 + $0x5]]
    %s32 = sld [smem:[#allocation2 + $0x6]]
    %s33 = sld [smem:[#allocation2 + $0x7]]
    %s34 = sld [smem:[#allocation2 + $0x8]]
    %s35 = sld [smem:[#allocation2 + $0x9]]
    %s36 = sld [smem:[#allocation2 + $0xa]]
    %s37 = sld [smem:[#allocation2 + $0xb]]
    %s38 = sld [smem:[#allocation2 + $0xc]]
    %s39 = sld [smem:[#allocation2 + $0xd]]
    %s40 = sld [smem:[#allocation2 + $0xe]]
    %s41 = sld [smem:[#allocation2 + $0xf]]
    %s42 = sld [smem:[#allocation2 + $0x10]]
    %s43 = sld [smem:[#allocation2 + $0x11]]
    %s44 = sld [smem:[#allocation2 + $0x12]]
    %s45 = sld [smem:[#allocation2 + $0x13]]
    %s46 = sld [smem:[#allocation2 + $0x14]]
    %s47 = sld [smem:[#allocation2 + $0x15]]
    %s48 = sld [smem:[#allocation2 + $0x16]]
    %s49 = sld [smem:[#allocation2 + $0x17]]
    %s50 = sld [smem:[#allocation2 + $0x18]]
    %s51 = sld [smem:[#allocation2 + $0x19]]
    %s52 = sld [smem:[#allocation2 + $0x1a]]
    %s53 = sld [smem:[#allocation2 + $0x1b]]
    %s54 = sld [smem:[#allocation2 + $0x1c]]
    %s55 = sld [smem:[#allocation2 + $0x1d]]
    %s56 = sld [smem:[#allocation2 + $0x1e]]
    %s57 = sld [smem:[#allocation2 + $0x1f]]
    %s58 = sld [smem:[#allocation2 + $0x20]]
    %s59 = sld [smem:[#allocation2 + $0x21]]
    %s60 = sld [smem:[#allocation2 + $0x22]]
    %s61 = sld [smem:[#allocation2 + $0x23]]
    %s62 = sld [smem:[#allocation2 + $0x24]]
    %s63 = sld [smem:[#allocation2 + $0x25]]
    %s64 = sld [smem:[#allocation2 + $0x26]]
    %s65 = sld [smem:[#allocation2 + $0x27]]
    %s66 = sld [smem:[#allocation2 + $0x28]]
    %s67 = sld [smem:[#allocation2 + $0x29]]
    %s68 = sld [smem:[#allocation2 + $0x2a]]
    %s69 = sld [smem:[#allocation2 + $0x2b]]
    %s70 = sld [smem:[#allocation2 + $0x2c]]
    %s71 = sld [smem:[#allocation2 + $0x2d]]
    %s72 = sld [smem:[#allocation2 + $0x2e]]
    %s73 = sld [smem:[#allocation2 + $0x2f]]
    %s74 = sld [smem:[#allocation2 + $0x30]]
    %s75 = sld [smem:[#allocation2 + $0x31]]
    %s76 = sld [smem:[#allocation2 + $0x32]]
    %v77 = vld [vmem:[%s1] sm:$0xff]
    %v78 = vld [vmem:[%s2] sm:$0xff]
    %v79 = vstv %s26
    %v80 = vmul.f32 %v79, %v77
    %v81 = vstv %s31
    %v82 = vmul.f32 %v81, %v78
    %v83 = vadd.f32 %v80, %v82
    %v84 = vstv %s36
    %v85 = vadd.f32 %v83, %v84
    %v86 = vmul.f32 %v85, 0.1
    %v87 = vmax.f32 %v85, %v86
    %v88 = vstv %s27
    %v89 = vmul.f32 %v88, %v77
    %v90 = vstv %s32
    %v91 = vmul.f32 %v90, %v78
    %v92 = vadd.f32 %v89, %v91
    %v93 = vstv %s37
    %v94 = vadd.f32 %v92, %v93
    %v95 = vmul.f32 %v94, 0.1
    %v96 = vmax.f32 %v94, %v95
    %v97 = vstv %s28
    %v98 = vmul.f32 %v97, %v77
    %v99 = vstv %s33
    %v100 = vmul.f32 %v99, %v78
    %v101 = vadd.f32 %v98, %v100
    %v102 = vstv %s38
    %v103 = vadd.f32 %v101, %v102
    %v104 = vmul.f32 %v103, 0.1
    %v105 = vmax.f32 %v103, %v104
    %v106 = vstv %s29
    %v107 = vmul.f32 %v106, %v77
    %v108 = vstv %s34
    %v109 = vmul.f32 %v108, %v78
    %v110 = vadd.f32 %v107, %v109
    %v111 = vstv %s39
    %v112 = vadd.f32 %v110, %v111
    %v113 = vmul.f32 %v112, 0.1
    %v114 = vmax.f32 %v112, %v113
    %v115 = vstv %s30
    %v116 = vmul.f32 %v115, %v77
    %v117 = vstv %s35
    %v118 = vmul.f32 %v117, %v78
    %v119 = vadd.f32 %v116, %v118
    %v120 = vstv %s40
    %v121 = vadd.f32 %v119, %v120
    %v122 = vmul.f32 %v121, 0.1
    %v123 = vmax.f32 %v121, %v122
    %v124 = vstv %s41
    %v125 = vmul.f32 %v87, %v124
    %v126 = vstv %s46
    %v127 = vmul.f32 %v96, %v126
    %v128 = vadd.f32 %v125, %v127
    %v129 = vstv %s51
    %v130 = vmul.f32 %v105, %v129
    %v131 = vadd.f32 %v128, %v130
    %v132 = vstv %s56
    %v133 = vmul.f32 %v114, %v132
    %v134 = vadd.f32 %v131, %v133
    %v135 = vstv %s61
    %v136 = vmul.f32 %v123, %v135
    %v137 = vadd.f32 %v134, %v136
    %v138 = vstv %s66
    %v139 = vadd.f32 %v137, %v138
    %v140 = vmul.f32 %v139, 0.1
    %v141 = vmax.f32 %v139, %v140
    %v142 = vstv %s71
    %v143 = vmul.f32 %v141, %v142
    %v144 = vstv %s42
    %v145 = vmul.f32 %v87, %v144
    %v146 = vstv %s47
    %v147 = vmul.f32 %v96, %v146
    %v148 = vadd.f32 %v145, %v147
    %v149 = vstv %s52
    %v150 = vmul.f32 %v105, %v149
    %v151 = vadd.f32 %v148, %v150
    %v152 = vstv %s57
    %v153 = vmul.f32 %v114, %v152
    %v154 = vadd.f32 %v151, %v153
    %v155 = vstv %s62
    %v156 = vmul.f32 %v123, %v155
    %v157 = vadd.f32 %v154, %v156
    %v158 = vstv %s67
    %v159 = vadd.f32 %v157, %v158
    %v160 = vmul.f32 %v159, 0.1
    %v161 = vmax.f32 %v159, %v160
    %v162 = vstv %s72
    %v163 = vmul.f32 %v161, %v162
    %v164 = vadd.f32 %v143, %v163
    %v165 = vstv %s43
    %v166 = vmul.f32 %v87, %v165
    %v167 = vstv %s48
    %v168 = vmul.f32 %v96, %v167
    %v169 = vadd.f32 %v166, %v168
    %v170 = vstv %s53
    %v171 = vmul.f32 %v105, %v170
    %v172 = vadd.f32 %v169, %v171
    %v173 = vstv %s58
    %v174 = vmul.f32 %v114, %v173
    %v175 = vadd.f32 %v172, %v174
    %v176 = vstv %s63
    %v177 = vmul.f32 %v123, %v176
    %v178 = vadd.f32 %v175, %v177
    %v179 = vstv %s68
    %v180 = vadd.f32 %v178, %v179
    %v181 = vmul.f32 %v180, 0.1
    %v182 = vmax.f32 %v180, %v181
    %v183 = vstv %s73
    %v184 = vmul.f32 %v182, %v183
    %v185 = vadd.f32 %v164, %v184
    %v186 = vstv %s44
    %v187 = vmul.f32 %v87, %v186
    %v188 = vstv %s49
    %v189 = vmul.f32 %v96, %v188
    %v190 = vadd.f32 %v187, %v189
    %v191 = vstv %s54
    %v192 = vmul.f32 %v105, %v191
    %v193 = vadd.f32 %v190, %v192
    %v194 = vstv %s59
    %v195 = vmul.f32 %v114, %v194
    %v196 = vadd.f32 %v193, %v195
    %v197 = vstv %s64
    %v198 = vmul.f32 %v123, %v197
    %v199 = vadd.f32 %v196, %v198
    %v200 = vstv %s69
    %v201 = vadd.f32 %v199, %v200
    %v202 = vmul.f32 %v201, 0.1
    %v203 = vmax.f32 %v201, %v202
    %v204 = vstv %s74
    %v205 = vmul.f32 %v203, %v204
    %v206 = vadd.f32 %v185, %v205
    %v207 = vstv %s45
    %v208 = vmul.f32 %v87, %v207
    %v209 = vstv %s50
    %v210 = vmul.f32 %v96, %v209
    %v211 = vadd.f32 %v208, %v210
    %v212 = vstv %s55
    %v213 = vmul.f32 %v105, %v212
    %v214 = vadd.f32 %v211, %v213
    %v215 = vstv %s60
    %v216 = vmul.f32 %v114, %v215
    %v217 = vadd.f32 %v214, %v216
    %v218 = vstv %s65
    %v219 = vmul.f32 %v123, %v218
    %v220 = vadd.f32 %v217, %v219
    %v221 = vstv %s70
    %v222 = vadd.f32 %v220, %v221
    %v223 = vmul.f32 %v222, 0.1
    %v224 = vmax.f32 %v222, %v223
    %v225 = vstv %s75
    %v226 = vmul.f32 %v224, %v225
    %v227 = vadd.f32 %v206, %v226
    %v228 = vstv %s76
    %v229 = vadd.f32 %v227, %v228
    %v230 = vmul.f32 %v229, 0.5
    %v231 = vtanh.pop %v230
    %v232 = vmul.f32 %v231, 0.5
    %v233 = vadd.f32 %v232, 0.5
    %234 = vst [vmem:[#allocation5] sm:$0xff] %v233
    // Predicated region
    $region18: #{tpu_custom_call.1} parent=1 // pred_check
      _
    $region19: #{tpu_custom_call.1} parent=1 // pred_check_branch
      %236 = sbr.rel (0) target = $region21
    $region20: #{tpu_custom_call.1} parent=1 // pred_region
      %s238 = ssub.s32 128, 16
      %239 = vsyncadd [#allocation3], %s238
      %s240 = sshll.u32 [#allocation5], 4
      %s241 = int_to_ptr.vmem [resolvable:$true] %s240
      %246 = dma.vmem_to_hbm [thread:$0]  %s241, 16, %s3, [#allocation3], 16, 16, 1
    $region21: #{tpu_custom_call.1} parent=1 // pred_fallthru
      _
    // Predicated region
    $region22: #{tpu_custom_call.1} parent=1 // pred_check
      _
    $region23: #{tpu_custom_call.1} parent=1 // pred_check_branch
      %248 = sbr.rel (0) target = $region25
    $region24: #{tpu_custom_call.1} parent=1 // pred_region
      %249 = dma.done [#allocation3], 128
    $region25: #{tpu_custom_call.1} parent=1 // pred_fallthru
      _
    %250 = vsyncpa [#allocation3], 1
    %251 = vsyncpa [#allocation4], 1

</llo_original>
